<compile_context>
chip_gen: v7x
topology: tpu7x:2x2x1
jax: 0.10.0
libtpu: 0.0.40
codegen_flags: <defaults>
</compile_context>

<pallas_src>
import functools

import jax
import jax.numpy as jnp
from jax.experimental import pallas as pl
from jax.experimental.pallas import tpu as pltpu


def _round_up(x: int, m: int) -> int:
    return ((x + m - 1) // m) * m


def _sanitize_mask_kernel(boxes_ref, mask_ref, *, min_size, min_area):
    """Per-box validity mask, lane-dense.

    boxes_ref: (4, TN) float32 VMEM tile, rows = (x0, y0, x1, y1), boxes on lanes.
    mask_ref:  (1, TN) int32  VMEM tile, 1 = keep, 0 = drop.
    """
    b = boxes_ref[...]                       # (4, TN)
    x0 = b[0:1, :]
    y0 = b[1:2, :]
    x1 = b[2:3, :]
    y1 = b[3:4, :]
    ws = x1 - x0                             # (1, TN)
    hs = y1 - y0                             # (1, TN)
    # Explicit ANDs instead of a width-4 last-axis reduction (keeps it on VPU).
    nonneg = (x0 >= 0.0) & (y0 >= 0.0) & (x1 >= 0.0) & (y1 >= 0.0)
    valid = (
        (ws >= float(min_size))
        & (hs >= float(min_size))
        & nonneg
        & (ws * hs >= float(min_area))
    )
    mask_ref[...] = valid.astype(jnp.int32)


def sanitize_bboxes_mask(boxes, *, min_size=1, min_area=1, tile_n=32768):
    """Pallas call producing the int32 validity mask of shape (N,).

    boxes: (N, 4) float32 xyxy.
    """
    n = boxes.shape[0]
    # Pick a lane-dense, 128-aligned tile over N; pad N up to a tile multiple.
    tn = min(tile_n, _round_up(max(n, 1), 128))
    n_pad = _round_up(max(n, 1), tn)

    # Wrapper-side layout plumbing (free): pad with -1 (always invalid) and
    # transpose so boxes land on lanes, coordinates on sublanes.
    boxes_p = jnp.pad(boxes, ((0, n_pad - n), (0, 0)), constant_values=-1.0)
    boxes_t = boxes_p.T                      # (4, n_pad)

    kernel = functools.partial(
        _sanitize_mask_kernel, min_size=min_size, min_area=min_area
    )
    mask = pl.pallas_call(
        kernel,
        out_shape=jax.ShapeDtypeStruct((1, n_pad), jnp.int32),
        grid=(n_pad // tn,),
        in_specs=[pl.BlockSpec((4, tn), lambda i: (0, i))],
        out_specs=pl.BlockSpec((1, tn), lambda i: (0, i)),
        compiler_params=pltpu.CompilerParams(
            dimension_semantics=("parallel",)
        ),
    )(boxes_t)
    return mask[0, :n]                       # (N,) int32


def sanitize_bounding_boxes_forward(image, boxes, *, min_size=1, min_area=1):
    """Equivalent of SanitizeBoundingBoxes.forward.

    Returns (image, compacted_boxes, num_valid, valid_mask).
    compacted_boxes holds the surviving boxes (original order) in its first
    `num_valid` rows, zero-padded afterwards.
    """
    if min_size < 1:
        raise ValueError(f"min_size must be at least 1, but got {min_size} instead.")
    if min_area < 1:
        raise ValueError(f"min_area must be at least 1, but got {min_area} instead.")

    n = boxes.shape[0]
    mask_n = sanitize_bboxes_mask(boxes, min_size=min_size, min_area=min_area)
    valid = mask_n.astype(bool)                              # (N,)

    # TODO(synk): PyTorch returns dynamically-sized bboxes[valid]; JAX needs
    # static shapes, so we stably compact valid boxes to the front and zero-pad.
    # O(N) cumsum + scatter replaces the previous O(N log N) stable argsort;
    # num_valid comes out of the same cumsum for free.
    cum = jnp.cumsum(mask_n)                                 # (N,)
    num_valid = cum[-1]
    dest = jnp.where(valid, cum - 1, n)                      # invalid -> OOB (dropped)
    compacted = (
        jnp.zeros((n, 4), boxes.dtype).at[dest].set(boxes, mode="drop")
    )

    return image, compacted, num_valid, valid


def _reference_mask(boxes, min_size, min_area):
    ws = boxes[:, 2] - boxes[:, 0]
    hs = boxes[:, 3] - boxes[:, 1]
    return (
        (ws >= min_size)
        & (hs >= min_size)
        & jnp.all(boxes >= 0, axis=-1)
        & (ws * hs >= min_area)
    )


if __name__ == "__main__":
    key = jax.random.PRNGKey(0)
    k_img, k_box = jax.random.split(key)

    # Small image, 3 x 16 x 16 (CHW), passed through unchanged.
    image = jax.random.normal(k_img, (3, 16, 16), dtype=jnp.float32)

    # 8 boxes in xyxy, mostly valid, with a few deliberately invalid ones.
    xy0 = jax.random.uniform(k_box, (8, 2), minval=0.0, maxval=8.0)
    wh = jax.random.uniform(jax.random.PRNGKey(1), (8, 2), minval=2.0, maxval=6.0)
    boxes = jnp.concatenate([xy0, xy0 + wh], axis=-1).astype(jnp.float32)
    boxes = boxes.at[2, 0].set(-1.0)               # negative coord -> invalid
    boxes = boxes.at[5, 2].set(boxes[5, 0] + 0.3)  # width < min_size -> invalid
    boxes = boxes.at[6, 3].set(boxes[6, 1])        # zero height -> invalid

    out_image, sanitized, num_valid, valid = jax.block_until_ready(
        sanitize_bounding_boxes_forward(image, boxes, min_size=1, min_area=1)
    )

    # Sanity-check the Pallas mask against a pure-JAX reference.
    ref_valid = _reference_mask(boxes, 1, 1)
    assert bool(jnp.all(valid == ref_valid)), "mask mismatch vs reference"
    assert int(num_valid) == int(jnp.sum(ref_valid)), "num_valid mismatch"
    ref_compacted = boxes[ref_valid]
    assert bool(
        jnp.allclose(sanitized[: int(num_valid)], ref_compacted)
    ), "compacted boxes mismatch"
    assert bool(jnp.all(sanitized[int(num_valid):] == 0.0)), "padding not zeroed"
    assert bool(jnp.all(out_image == image))

    print("KERNEL_OK")
</pallas_src>

<mosaic_0001>
module attributes {stable_mosaic.version = 11 : i64} {
  func.func @_sanitize_mask_kernel(%arg0: i32, %arg1: memref<4x128xf32, #tpu.memory_space<vmem>>, %arg2: memref<1x128xi32, #tpu.memory_space<vmem>>) attributes {dimension_semantics = [#tpu.dimension_semantics<parallel>], iteration_bounds = array<i64: 1>, scalar_prefetch = 0 : i64, scratch_operands = 0 : i64, tpu.core_type = #tpu.core_type<tc>, window_params = [{transform_indices = @transform_0, window_bounds = array<i64: 4, 128>}, {transform_indices = @transform_1, window_bounds = array<i64: 1, 128>}]} {
    %c0 = arith.constant 0 : index
    %c0_0 = arith.constant 0 : index
    %0 = vector.load %arg1[%c0, %c0_0] : memref<4x128xf32, #tpu.memory_space<vmem>>, vector<4x128xf32>
    %1 = vector.extract_strided_slice %0 {offsets = [0, 0], sizes = [1, 128], strides = [1, 1]} : vector<4x128xf32> to vector<1x128xf32>
    %2 = vector.extract_strided_slice %0 {offsets = [1, 0], sizes = [1, 128], strides = [1, 1]} : vector<4x128xf32> to vector<1x128xf32>
    %3 = vector.extract_strided_slice %0 {offsets = [2, 0], sizes = [1, 128], strides = [1, 1]} : vector<4x128xf32> to vector<1x128xf32>
    %4 = vector.extract_strided_slice %0 {offsets = [3, 0], sizes = [1, 128], strides = [1, 1]} : vector<4x128xf32> to vector<1x128xf32>
    %5 = arith.subf %3, %1 : vector<1x128xf32>
    %6 = arith.subf %4, %2 : vector<1x128xf32>
    %cst = arith.constant 0.000000e+00 : f32
    %7 = vector.broadcast %cst : f32 to vector<1x128xf32>
    %8 = arith.cmpf oge, %1, %7 : vector<1x128xf32>
    %cst_1 = arith.constant 0.000000e+00 : f32
    %9 = vector.broadcast %cst_1 : f32 to vector<1x128xf32>
    %10 = arith.cmpf oge, %2, %9 : vector<1x128xf32>
    %11 = arith.andi %8, %10 : vector<1x128xi1>
    %cst_2 = arith.constant 0.000000e+00 : f32
    %12 = vector.broadcast %cst_2 : f32 to vector<1x128xf32>
    %13 = arith.cmpf oge, %3, %12 : vector<1x128xf32>
    %14 = arith.andi %11, %13 : vector<1x128xi1>
    %cst_3 = arith.constant 0.000000e+00 : f32
    %15 = vector.broadcast %cst_3 : f32 to vector<1x128xf32>
    %16 = arith.cmpf oge, %4, %15 : vector<1x128xf32>
    %17 = arith.andi %14, %16 : vector<1x128xi1>
    %cst_4 = arith.constant 1.000000e+00 : f32
    %18 = vector.broadcast %cst_4 : f32 to vector<1x128xf32>
    %19 = arith.cmpf oge, %5, %18 : vector<1x128xf32>
    %cst_5 = arith.constant 1.000000e+00 : f32
    %20 = vector.broadcast %cst_5 : f32 to vector<1x128xf32>
    %21 = arith.cmpf oge, %6, %20 : vector<1x128xf32>
    %22 = arith.andi %19, %21 : vector<1x128xi1>
    %23 = arith.andi %22, %17 : vector<1x128xi1>
    %24 = arith.mulf %5, %6 : vector<1x128xf32>
    %cst_6 = arith.constant 1.000000e+00 : f32
    %25 = vector.broadcast %cst_6 : f32 to vector<1x128xf32>
    %26 = arith.cmpf oge, %24, %25 : vector<1x128xf32>
    %27 = arith.andi %23, %26 : vector<1x128xi1>
    %28 = arith.extui %27 : vector<1x128xi1> to vector<1x128xi32>
    %c0_7 = arith.constant 0 : index
    %c0_8 = arith.constant 0 : index
    %29 = vector.load %arg2[%c0_7, %c0_8] : memref<1x128xi32, #tpu.memory_space<vmem>>, vector<1x128xi32>
    tpu.vector_store %arg2[%c0_7, %c0_8], %28 {strides = array<i32>} : memref<1x128xi32, #tpu.memory_space<vmem>>, vector<1x128xi32>,
    return
  }
  func.func @transform_0(%arg0: i32) -> (i32, i32) {
    %c0_i32 = arith.constant 0 : i32
    %c0_i32_0 = arith.constant 0 : i32
    return %c0_i32, %arg0 : i32, i32
  }
  func.func @transform_1(%arg0: i32) -> (i32, i32) {
    %c0_i32 = arith.constant 0 : i32
    %c0_i32_0 = arith.constant 0 : i32
    return %c0_i32, %arg0 : i32, i32
  }
}

</mosaic_0001>

<llo_original>
// kernel: tpu_custom_call.1
$region0: #{tpu_custom_call.1}
  #allocation0 [shape = 'u32[]', space=smem, size = 0x4, offset = 0x4, fixed_abs, tag = 'smem constant byte address 0x4 - core index']
  #allocation1 [shape = 'u32[144,128]{1,0:T(1,128)}', space=vmem, size = 0x12000, scoped, tag = 'internal scratch']
  %s0 = inlined_call_operand.hbm [shape: f32[4,128], index: 0, kind: input, shape index: {}]
  %s1 = inlined_call_operand.hbm [shape: s32[1,128], index: 1, kind: output, shape index: {}]
  %s2 = sld [smem:[#allocation0]]
  $region18: #{tpu_custom_call.1} parent=0
    _
  %s4 = ssub.s32 1, %s2
  %s5 = scalar_select 0, %s4, %s2
  $region1: #{tpu_custom_call.1} parent=0
    #allocation2 [shape = 'u8[2048]{0}', space=vmem, size = 0x800, scoped, tag = 'input window, operand 0, single buffered']
    #allocation3 [shape = 's32[1]{0}', space=sflag, size = 0x4, scoped, tag = 'scoped memory for tpu_custom_call.1']
    #allocation4 [shape = 's32[1]{0}', space=sflag, size = 0x4, scoped, tag = 'scoped memory for tpu_custom_call.1']
    #allocation5 [shape = 'u8[512]{0}', space=vmem, size = 0x400, scoped, tag = 'output window, operand 0, single buffered']
    %6 = vsyncpa [#allocation3], 0
    %7 = vsyncpa [#allocation4], 0
    // Predicated region
    $region2: #{tpu_custom_call.1} parent=1 // pred_check
      _
    $region3: #{tpu_custom_call.1} parent=1 // pred_check_branch
      %9 = sbr.rel (0) target = $region5
    $region4: #{tpu_custom_call.1} parent=1 // pred_region
      %s11 = ssub.s32 64, 64
      %12 = vsyncadd [#allocation3], %s11
      %s14 = sshll.u32 [#allocation2], 4
      %s15 = int_to_ptr.vmem [resolvable:$true] %s14
      %17 = dma.hbm_to_vmem [thread:$0]  %s0, 64, %s15, [#allocation3]
    $region5: #{tpu_custom_call.1} parent=1 // pred_fallthru
      _
    // Predicated region
    $region6: #{tpu_custom_call.1} parent=1 // pred_check
      _
    $region7: #{tpu_custom_call.1} parent=1 // pred_check_branch
      %19 = sbr.rel (0) target = $region9
    $region8: #{tpu_custom_call.1} parent=1 // pred_region
      %20 = dma.done [#allocation3], 64
    $region9: #{tpu_custom_call.1} parent=1 // pred_fallthru
      _
    %v21 = vld [vmem:[#allocation2] sm:$0xf]
    %v23 = vrot.slane %v21, 6
    %v25 = vsub.f32 %v21, %v23
    %vm26 = vcmp.ge.f32.partialorder %v21, 0.0
    %v27 = vsel %vm26, 1, 0
    %v28 = vrot.slane %v27, 1
    %vm29 = vcmp.ne.s32.totalorder %v28, 0
    %vm30 = vmand %vm26, %vm29
    %v31 = vrot.slane %v27, 2
    %vm32 = vcmp.ne.s32.totalorder %v31, 0
    %vm33 = vmand %vm30, %vm32
    %v34 = vrot.slane %v27, 3
    %vm35 = vcmp.ne.s32.totalorder %v34, 0
    %vm36 = vmand %vm33, %vm35
    %vm37 = vcmp.ge.f32.partialorder %v25, 1.0
    %v38 = vsel %vm37, 1, 0
    %v39 = vrot.slane %v38, 1
    %vm40 = vcmp.ne.s32.totalorder %v39, 0
    %vm41 = vmand %vm37, %vm40
    %v42 = vsel %vm36, 1, 0
    %v43 = vrot.slane %v42, 6
    %vm44 = vcmp.ne.s32.totalorder %v43, 0
    %vm45 = vmand %vm41, %vm44
    %v47 = vrot.slane %v25, 1
    %v49 = vmul.f32 %v25, %v47
    %vm50 = vcmp.ge.f32.partialorder %v49, 1.0
    %vm51 = vmand %vm45, %vm50
    %v52 = vsel %vm51, 1, 0
    %53 = vst [vmem:[#allocation5 - $0x2] sm:$0x4] %v52
    // Predicated region
    $region10: #{tpu_custom_call.1} parent=1 // pred_check
      _
    $region11: #{tpu_custom_call.1} parent=1 // pred_check_branch
      %55 = sbr.rel (0) target = $region13
    $region12: #{tpu_custom_call.1} parent=1 // pred_region
      %s57 = ssub.s32 16, 16
      %58 = vsyncadd [#allocation4], %s57
      %s60 = sshll.u32 [#allocation5], 4
      %s61 = int_to_ptr.vmem [resolvable:$true] %s60
      %63 = dma.vmem_to_hbm [thread:$0]  %s61, 16, %s1, [#allocation4]
    $region13: #{tpu_custom_call.1} parent=1 // pred_fallthru
      _
    // Predicated region
    $region14: #{tpu_custom_call.1} parent=1 // pred_check
      _
    $region15: #{tpu_custom_call.1} parent=1 // pred_check_branch
      %65 = sbr.rel (0) target = $region17
    $region16: #{tpu_custom_call.1} parent=1 // pred_region
      %66 = dma.done [#allocation4], 16
    $region17: #{tpu_custom_call.1} parent=1 // pred_fallthru
      _
    %67 = vsyncpa [#allocation3], 1
    %68 = vsyncpa [#allocation4], 1

</llo_original>
